<compile_context>
chip_gen: v7x
topology: tpu7x:2x2x1
jax: 0.10.0
libtpu: 0.0.40
codegen_flags: <defaults>
</compile_context>

<pallas_src>
import jax
import jax.numpy as jnp
from jax import lax
from jax.experimental import pallas as pl
from jax.experimental.pallas import tpu as pltpu

LANE = 128


def _make_kernel(n_valid, tiles_per_split, w_temp, w_ce):
    """n_valid: real batch size; w_temp = p/(N*C); w_ce = (1-p)/N (Python floats)."""

    def kernel(x_ref, lab_ref, out_ref, acc_ref):
        s = pl.program_id(0)              # per-TC split ("parallel")
        j = pl.program_id(1)              # reduction over batch tiles ("arbitrary")
        nj = pl.num_programs(1)

        @pl.when(j == 0)
        def _init():
            acc_ref[...] = jnp.zeros_like(acc_ref)

        x = x_ref[...].astype(jnp.float32)      # (C, TN): classes on sublanes, batch on lanes
        lab = lab_ref[...]                      # (1, TN) int32
        C, TN = x.shape

        # one-hot of the label along the class (sublane) axis
        cls = lax.broadcasted_iota(jnp.int32, (C, TN), 0)
        onehot = cls == lab

        # true-class logit gathered to a (1, TN) row (select + sublane sum -> XLU)
        picked = jnp.sum(jnp.where(onehot, x, 0.0), axis=0, keepdims=True)

        # log-sum-exp over classes; only exp touches (C, TN) (EUP slot)
        m = jnp.max(x, axis=0, keepdims=True)
        ssum = jnp.sum(jnp.exp(x - m), axis=0, keepdims=True)
        lse = m + jnp.log(ssum)

        # "temp" term: g(v) = v+2 if v > -1 else 0 applied to x with the label entry
        # negated.  Compute sum_c g(x_c) at (C,TN), then fix up the label entry at
        # (1,TN):  + g(-picked) - g(picked).
        gsum = jnp.sum(jnp.where(x > -1.0, x + 2.0, 0.0), axis=0, keepdims=True)
        g_neg = jnp.where(picked < 1.0, 2.0 - picked, 0.0)     # g(-picked)
        g_pos = jnp.where(picked > -1.0, picked + 2.0, 0.0)    # g(+picked)
        temp_sum = gsum + (g_neg - g_pos)

        # CE(LogSoftmax(x), y) == lse - x[y]  (second log_softmax is the identity)
        contrib = w_temp * temp_sum + w_ce * (lse - picked)    # (1, TN)

        # mask batch-padding columns of the (possibly partial) edge block.  Select
        # (not multiply) so unspecified data / garbage labels cannot leak NaN.
        col = lax.broadcasted_iota(jnp.int32, (1, TN), 1)
        gcol = (s * tiles_per_split + j) * TN + col
        acc_ref[...] += jnp.where(gcol < n_valid, contrib, 0.0)

        @pl.when(j == nj - 1)
        def _finalize():
            partial = jnp.sum(acc_ref[...])     # single cross-lane reduce of (1, TN)
            out_ref[...] = jnp.full(out_ref.shape, partial, dtype=out_ref.dtype)

    return kernel


def _jax_loss(output, labels, p):
    # small-batch fast path (same math as the kernel, single log_softmax)
    N, C = output.shape
    x = output.astype(jnp.float32)
    onehot = jax.nn.one_hot(labels, C, dtype=bool)
    temp = jnp.where(onehot, -x, x)
    temp = jnp.where(temp > -1.0, temp + 2.0, 0.0)
    ls = jax.nn.log_softmax(x, axis=1)
    ce = -jnp.mean(jnp.sum(jnp.where(onehot, ls, 0.0), axis=1))
    return p * jnp.mean(temp) + (1.0 - p) * ce


def custom_loss(output, labels, p=0.5, *, lane_tile=32768, num_splits=1,
                use_pallas=None):
    """output: [N, C] float32/bfloat16 logits; labels: [N] int class ids -> scalar f32.

    num_splits=1 is right for single-TensorCore chips (v5e/v6e); pass 2 on v7x to
    shard the batch halves across the two TensorCores.
    """
    N, C = output.shape
    if use_pallas is None:
        use_pallas = N >= 4096          # below a few thousand samples Pallas overhead dominates
    if not use_pallas:
        return _jax_loss(output, labels, p)

    # [C, N] layout: classes -> sublanes (C=10 padded to 16 in vregs, 1.6x), batch
    # -> the 128-wide lane axis.  The transpose is one XLA copy over the logits;
    # feed [C, N] logits directly (or rely on operand input-fusion) to remove it.
    xt = output.T                                   # (C, N), caller dtype preserved
    lab = labels.astype(jnp.int32).reshape(1, N)

    # Lane tiling (no padding pass over the logits; the edge block is partial and
    # masked in-kernel).  Tiny batches (< 128) are padded — negligible cost there.
    if N < LANE:
        pad = LANE - N
        xt = jnp.pad(xt, ((0, 0), (0, pad)))
        lab = jnp.pad(lab, ((0, 0), (0, pad)))
        n_cols = LANE
    else:
        n_cols = N
    tn = max(LANE, min((int(lane_tile) // LANE) * LANE, (n_cols // LANE) * LANE))
    tiles_total = pl.cdiv(n_cols, tn)
    tiles_per_split = pl.cdiv(tiles_total, num_splits)
    max_block = tiles_total - 1

    if num_splits == 1:
        x_map = lambda s, j: (0, j)
    else:
        # clamp fully-out-of-range tiles back onto the array; their columns are
        # masked in-kernel from the *unclamped* index, so nothing is double counted.
        x_map = lambda s, j: (0, jnp.minimum(s * tiles_per_split + j, max_block))
    l_map = x_map

    w_temp = float(p) / float(N * C)
    w_ce = (1.0 - float(p)) / float(N)
    kernel = _make_kernel(N, tiles_per_split, w_temp, w_ce)

    itemsize = jnp.dtype(output.dtype).itemsize
    cost = pl.CostEstimate(
        flops=12 * N * C,
        transcendentals=N * (C + 1),
        bytes_accessed=N * C * itemsize + N * 4 + num_splits * 8 * LANE * 4,
    )

    partials = pl.pallas_call(
        kernel,
        out_shape=jax.ShapeDtypeStruct((num_splits, 8, LANE), jnp.float32),
        grid=(num_splits, tiles_per_split),
        in_specs=[
            pl.BlockSpec((C, tn), x_map),
            pl.BlockSpec((1, tn), l_map),
        ],
        out_specs=pl.BlockSpec((1, 8, LANE), lambda s, j: (s, 0, 0)),
        scratch_shapes=[pltpu.VMEM((1, tn), jnp.float32)],
        compiler_params=pltpu.CompilerParams(
            dimension_semantics=("parallel", "arbitrary"),
        ),
        cost_estimate=cost,
    )(xt, lab)

    # combine the per-split partial sums (one per TensorCore split)
    return jnp.sum(partials[:, 0, 0])


def _reference(output, labels, p=0.5):
    # pure-JAX reference with the literal PyTorch semantics (double log_softmax)
    N, C = output.shape
    onehot = jax.nn.one_hot(labels, C, dtype=bool)
    temp = jnp.where(onehot, -output, output)
    temp = jnp.where(temp > -1.0, temp + 2.0, 0.0)
    ls1 = jax.nn.log_softmax(output.astype(jnp.float32), axis=1)
    ls2 = jax.nn.log_softmax(ls1, axis=1)   # CE's internal log_softmax (identity up to rounding)
    ce = -jnp.mean(jnp.sum(jnp.where(onehot, ls2, 0.0), axis=1))
    return p * jnp.mean(temp) + (1.0 - p) * ce


if __name__ == "__main__":
    key = jax.random.PRNGKey(0)
    k1, k2 = jax.random.split(key)
    N, C = 200, 10  # small MNIST-style logits: 2 lane tiles incl. a partial edge block
    output = jax.random.normal(k1, (N, C), dtype=jnp.float32) * 2.0
    labels = jax.random.randint(k2, (N,), 0, C, dtype=jnp.int32)

    loss = jax.block_until_ready(custom_loss(output, labels, use_pallas=True))
    ref = jax.block_until_ready(_reference(output, labels))
    assert jnp.allclose(loss, ref, atol=1e-4, rtol=1e-4), (loss, ref)
    print("KERNEL_OK")
</pallas_src>

<mosaic_0001>
module attributes {stable_mosaic.version = 11 : i64} {
  func.func @kernel(%arg0: i32, %arg1: i32, %arg2: memref<10x128xf32, #tpu.memory_space<vmem>>, %arg3: memref<1x128xi32, #tpu.memory_space<vmem>>, %arg4: memref<1x8x128xf32, #tpu.memory_space<vmem>>, %arg5: memref<1x128xf32, #tpu.memory_space<vmem>>) attributes {dimension_semantics = [#tpu.dimension_semantics<parallel>, #tpu.dimension_semantics<arbitrary>], iteration_bounds = array<i64: 1, 2>, scalar_prefetch = 0 : i64, scratch_operands = 1 : i64, tpu.core_type = #tpu.core_type<tc>, window_params = [{transform_indices = @transform_0, window_bounds = array<i64: 10, 128>}, {transform_indices = @transform_1, window_bounds = array<i64: 1, 128>}, {transform_indices = @transform_2, window_bounds = array<i64: 1, 8, 128>}]} {
    %c0_i32 = arith.constant 0 : i32
    %0 = arith.cmpi eq, %arg1, %c0_i32 : i32
    %1 = arith.extui %0 : i1 to i32
    %c0_i32_0 = arith.constant 0 : i32
    %2 = arith.cmpi ne, %1, %c0_i32_0 : i32
    scf.if %2 {
      %cst_25 = arith.constant 0.000000e+00 : f32
      %65 = vector.broadcast %cst_25 : f32 to vector<1x128xf32>
      %c0_26 = arith.constant 0 : index
      %c0_27 = arith.constant 0 : index
      %66 = vector.load %arg5[%c0_26, %c0_27] : memref<1x128xf32, #tpu.memory_space<vmem>>, vector<1x128xf32>
      tpu.vector_store %arg5[%c0_26, %c0_27], %65 {strides = array<i32>} : memref<1x128xf32, #tpu.memory_space<vmem>>, vector<1x128xf32>,
    } else {
    }
    %c0 = arith.constant 0 : index
    %c0_1 = arith.constant 0 : index
    %3 = vector.load %arg2[%c0, %c0_1] : memref<10x128xf32, #tpu.memory_space<vmem>>, vector<10x128xf32>
    %c0_2 = arith.constant 0 : index
    %c0_3 = arith.constant 0 : index
    %4 = vector.load %arg3[%c0_2, %c0_3] : memref<1x128xi32, #tpu.memory_space<vmem>>, vector<1x128xi32>
    %5 = tpu.iota {dimensions = array<i32: 0>} : vector<10x128xi32>
    %6 = vector.broadcast %4 : vector<1x128xi32> to vector<10x128xi32>
    %7 = arith.cmpi eq, %5, %6 : vector<10x128xi32>
    %cst = arith.constant 0.000000e+00 : f32
    %8 = vector.broadcast %cst : f32 to vector<10x128xf32>
    %9 = arith.select %7, %3, %8 : vector<10x128xi1>, vector<10x128xf32>
    %cst_4 = arith.constant dense<0.000000e+00> : vector<128xf32>
    %10 = vector.multi_reduction <add>, %9, %cst_4 [0] : vector<10x128xf32> to vector<128xf32>
    %11 = vector.shape_cast %10 : vector<128xf32> to vector<1x128xf32>
    %cst_5 = arith.constant dense<0xFF800000> : vector<128xf32>
    %12 = vector.multi_reduction <maximumf>, %3, %cst_5 [0] : vector<10x128xf32> to vector<128xf32>
    %13 = vector.shape_cast %12 : vector<128xf32> to vector<1x128xf32>
    %14 = vector.broadcast %13 : vector<1x128xf32> to vector<10x128xf32>
    %15 = arith.subf %3, %14 : vector<10x128xf32>
    %16 = math.exp %15 : vector<10x128xf32>
    %cst_6 = arith.constant dense<0.000000e+00> : vector<128xf32>
    %17 = vector.multi_reduction <add>, %16, %cst_6 [0] : vector<10x128xf32> to vector<128xf32>
    %18 = vector.shape_cast %17 : vector<128xf32> to vector<1x128xf32>
    %19 = math.log %18 : vector<1x128xf32>
    %20 = arith.addf %13, %19 : vector<1x128xf32>
    %cst_7 = arith.constant -1.000000e+00 : f32
    %21 = vector.broadcast %cst_7 : f32 to vector<10x128xf32>
    %22 = arith.cmpf ogt, %3, %21 : vector<10x128xf32>
    %cst_8 = arith.constant 2.000000e+00 : f32
    %23 = vector.broadcast %cst_8 : f32 to vector<10x128xf32>
    %24 = arith.addf %3, %23 : vector<10x128xf32>
    %cst_9 = arith.constant 0.000000e+00 : f32
    %25 = vector.broadcast %cst_9 : f32 to vector<10x128xf32>
    %26 = arith.select %22, %24, %25 : vector<10x128xi1>, vector<10x128xf32>
    %cst_10 = arith.constant dense<0.000000e+00> : vector<128xf32>
    %27 = vector.multi_reduction <add>, %26, %cst_10 [0] : vector<10x128xf32> to vector<128xf32>
    %28 = vector.shape_cast %27 : vector<128xf32> to vector<1x128xf32>
    %cst_11 = arith.constant 1.000000e+00 : f32
    %29 = vector.broadcast %cst_11 : f32 to vector<1x128xf32>
    %30 = arith.cmpf olt, %11, %29 : vector<1x128xf32>
    %cst_12 = arith.constant 2.000000e+00 : f32
    %31 = vector.broadcast %cst_12 : f32 to vector<1x128xf32>
    %32 = arith.subf %31, %11 : vector<1x128xf32>
    %cst_13 = arith.constant 0.000000e+00 : f32
    %33 = vector.broadcast %cst_13 : f32 to vector<1x128xf32>
    %34 = arith.select %30, %32, %33 : vector<1x128xi1>, vector<1x128xf32>
    %cst_14 = arith.constant -1.000000e+00 : f32
    %35 = vector.broadcast %cst_14 : f32 to vector<1x128xf32>
    %36 = arith.cmpf ogt, %11, %35 : vector<1x128xf32>
    %cst_15 = arith.constant 2.000000e+00 : f32
    %37 = vector.broadcast %cst_15 : f32 to vector<1x128xf32>
    %38 = arith.addf %11, %37 : vector<1x128xf32>
    %cst_16 = arith.constant 0.000000e+00 : f32
    %39 = vector.broadcast %cst_16 : f32 to vector<1x128xf32>
    %40 = arith.select %36, %38, %39 : vector<1x128xi1>, vector<1x128xf32>
    %41 = arith.subf %34, %40 : vector<1x128xf32>
    %42 = arith.addf %28, %41 : vector<1x128xf32>
    %cst_17 = arith.constant 2.500000e-04 : f32
    %43 = vector.broadcast %cst_17 : f32 to vector<1x128xf32>
    %44 = arith.mulf %43, %42 : vector<1x128xf32>
    %45 = arith.subf %20, %11 : vector<1x128xf32>
    %cst_18 = arith.constant 2.500000e-03 : f32
    %46 = vector.broadcast %cst_18 : f32 to vector<1x128xf32>
    %47 = arith.mulf %46, %45 : vector<1x128xf32>
    %48 = arith.addf %44, %47 : vector<1x128xf32>
    %49 = tpu.iota {dimensions = array<i32: 1>} : vector<1x128xi32>
    %c2_i32 = arith.constant 2 : i32
    %50 = arith.muli %arg0, %c2_i32 : i32
    %51 = arith.addi %50, %arg1 : i32
    %c128_i32 = arith.constant 128 : i32
    %52 = arith.muli %51, %c128_i32 : i32
    %53 = vector.broadcast %52 : i32 to vector<1x128xi32>
    %54 = arith.addi %53, %49 : vector<1x128xi32>
    %c0_19 = arith.constant 0 : index
    %c0_20 = arith.constant 0 : index
    %55 = vector.load %arg5[%c0_19, %c0_20] : memref<1x128xf32, #tpu.memory_space<vmem>>, vector<1x128xf32>
    %c200_i32 = arith.constant 200 : i32
    %56 = vector.broadcast %c200_i32 : i32 to vector<1x128xi32>
    %57 = arith.cmpi slt, %54, %56 : vector<1x128xi32>
    %cst_21 = arith.constant 0.000000e+00 : f32
    %58 = vector.broadcast %cst_21 : f32 to vector<1x128xf32>
    %59 = arith.select %57, %48, %58 : vector<1x128xi1>, vector<1x128xf32>
    %60 = arith.addf %55, %59 : vector<1x128xf32>
    %c0_22 = arith.constant 0 : index
    %c0_23 = arith.constant 0 : index
    %61 = vector.load %arg5[%c0_22, %c0_23] : memref<1x128xf32, #tpu.memory_space<vmem>>, vector<1x128xf32>
    tpu.vector_store %arg5[%c0_22, %c0_23], %60 {strides = array<i32>} : memref<1x128xf32, #tpu.memory_space<vmem>>, vector<1x128xf32>,
    %c1_i32 = arith.constant 1 : i32
    %62 = arith.cmpi eq, %arg1, %c1_i32 : i32
    %63 = arith.extui %62 : i1 to i32
    %c0_i32_24 = arith.constant 0 : i32
    %64 = arith.cmpi ne, %63, %c0_i32_24 : i32
    scf.if %64 {
      %c0_25 = arith.constant 0 : index
      %c0_26 = arith.constant 0 : index
      %65 = vector.load %arg5[%c0_25, %c0_26] : memref<1x128xf32, #tpu.memory_space<vmem>>, vector<1x128xf32>
      %66 = vector.shape_cast %65 : vector<1x128xf32> to vector<1x1x128xf32>
      %cst_27 = arith.constant dense<0.000000e+00> : vector<1xf32>
      %67 = vector.multi_reduction <add>, %66, %cst_27 [1, 2] : vector<1x1x128xf32> to vector<1xf32>
      %68 = vector.shape_cast %67 : vector<1xf32> to vector<1x1x1xf32>
      %69 = vector.extract %68[0, 0, 0] : f32 from vector<1x1x1xf32>
      %70 = vector.broadcast %69 : f32 to vector<1x8x128xf32>
      %c0_28 = arith.constant 0 : index
      %c0_29 = arith.constant 0 : index
      %c0_30 = arith.constant 0 : index
      %71 = vector.load %arg4[%c0_28, %c0_29, %c0_30] : memref<1x8x128xf32, #tpu.memory_space<vmem>>, vector<1x8x128xf32>
      tpu.vector_store %arg4[%c0_28, %c0_29, %c0_30], %70 {strides = array<i32>} : memref<1x8x128xf32, #tpu.memory_space<vmem>>, vector<1x8x128xf32>,
    } else {
    }
    return
  }
  func.func @transform_0(%arg0: i32, %arg1: i32) -> (i32, i32) {
    %c0_i32 = arith.constant 0 : i32
    %c0_i32_0 = arith.constant 0 : i32
    return %c0_i32, %arg1 : i32, i32
  }
  func.func @transform_1(%arg0: i32, %arg1: i32) -> (i32, i32) {
    %c0_i32 = arith.constant 0 : i32
    %c0_i32_0 = arith.constant 0 : i32
    return %c0_i32, %arg1 : i32, i32
  }
  func.func @transform_2(%arg0: i32, %arg1: i32) -> (i32, i32, i32) {
    %c0_i32 = arith.constant 0 : i32
    %c0_i32_0 = arith.constant 0 : i32
    %c0_i32_1 = arith.constant 0 : i32
    return %arg0, %c0_i32, %c0_i32_0 : i32, i32, i32
  }
}

</mosaic_0001>

<llo_original>
// kernel: tpu_custom_call.1
$region0: #{tpu_custom_call.1}
  #allocation0 [shape = 'u32[]', space=smem, size = 0x4, offset = 0x4, fixed_abs, tag = 'smem constant byte address 0x4 - core index']
  #allocation1 [shape = 'u32[144,128]{1,0:T(1,128)}', space=vmem, size = 0x12000, scoped, tag = 'internal scratch']
  #allocation2 [shape = 'f32[1,128]{1,0:T(1,128)}', space=vmem, size = 0x200, scoped, tag = 'scratch operand']
  %s0 = inlined_call_operand.hbm [shape: f32[10,200], index: 0, kind: input, shape index: {}]
  %s1 = inlined_call_operand.vmem [shape: s32[1,200], index: 1, kind: input, shape index: {}]
  %s2 = inlined_call_operand.hbm [shape: f32[1,8,128], index: 2, kind: output, shape index: {}]
  %s3 = sld [smem:[#allocation0]]
  $region53: #{tpu_custom_call.1} parent=0
    _
  %s5 = ssub.s32 1, %s3
  %s6 = scalar_select 0, %s5, %s3
  $region1: #{tpu_custom_call.1} parent=0
    #allocation3 [shape = 'u8[16384]{0}', space=vmem, size = 0x4000, scoped, tag = 'input window, operand 0']
    #allocation4 [shape = 's32[2]{0}', space=sflag, size = 0x8, scoped, tag = 'scoped memory for tpu_custom_call.1']
    #allocation5 [shape = 's32[2]{0}', space=sflag, size = 0x8, scoped, tag = 'scoped memory for tpu_custom_call.1']
    #allocation6 [shape = 'u8[4096]{0}', space=vmem, size = 0x1000, scoped, tag = 'output window, operand 0, single buffered']
    %7 = vsyncpa [#allocation4], 0
    %s8 = scalar_lea.sflag [#allocation4], 1
    %9 = vsyncpa %s8, 0
    %10 = vsyncpa [#allocation5], 0
    loop: start=0, step=1, limit=4
    $region2: #{tpu_custom_call.1} parent=1 // loop_pre_header
      _
    $region3: #{tpu_custom_call.1} parent=1 // loop_header
      %s12 = sphi 0, %s16
      %p13 = scmp.ge.s32.totalorder %s12, 4
      %s19 = sphi 0, %s31
      %s20 = sphi 0, %s27
      %s21 = sphi 0, %s19
      %s22 = sphi 0, %s20
      %s23 = sphi 0, %s21
      %s24 = sphi 0, %s22
      %s34 = sphi 0, %s36
      %s37 = sphi 0, %s34
      %s38 = sphi 0, %s37
      %s54 = sphi 0, %s38
      %s60 = sphi 0, %s62
      %s63 = sphi 0, %s60
      %s64 = sphi 0, %s63
      %s80 = sphi 0, %s64
      %s86 = sphi 0, %s88
      %s89 = sphi 0, %s86
      %s90 = sphi 0, %s89
      %s106 = sphi 0, %s90
    $region4: #{tpu_custom_call.1} parent=1 // loop_header_branch
      %15 = sbr.rel (%p13) target = $region8
    $region5: #{tpu_custom_call.1} parent=1 // loop_body
      %s17 = ssub.s32 %s12, 1
      %s18 = ssub.s32 %s12, 2
      %s25 = sadd.s32 1, %s20
      %p26 = scmp.ge.s32.totalorder %s25, 2
      %s27 = scalar_select %p26, 0, %s25
      %s28 = sadd.s32 1, %s19
      %s29 = scalar_select %p26, %s28, %s19
      %p30 = scmp.ge.s32.totalorder %s29, 1
      %s31 = scalar_select %p30, 0, %s29
      %s32 = ssub.s32 %s20, %s27
      %p33 = scmp.eq.s32.totalorder %s32, 0
      %s35 = sadd.s32 %s34, 1
      %s36 = scalar_select %p33, %s34, %s35
      %p39 = pneg %p33
      %p40 = scmp.eq.s32.totalorder %s12, 1
      %p41 = por %p39, %p40
      %p42 = scmp.ne.s32.totalorder %s34, %s37
      %p43 = scmp.eq.s32.totalorder %s12, 0
      %p44 = por %p42, %p43
      %p45 = scmp.ne.s32.totalorder %s34, %s37
      %p46 = scmp.eq.s32.totalorder %s17, 1
      %p47 = por %p45, %p46
      %p48 = scmp.ne.s32.totalorder %s37, %s38
      %p49 = scmp.eq.s32.totalorder %s17, 0
      %p50 = por %p48, %p49
      %p51 = scmp.ne.s32.totalorder %s37, %s38
      %p52 = scmp.eq.s32.totalorder %s18, 1
      %p53 = por %p51, %p52
      %p55 = scmp.ne.s32.totalorder %s38, %s54
      %p56 = scmp.eq.s32.totalorder %s18, 0
      %p57 = por %p55, %p56
      %s58 = ssub.s32 %s20, %s27
      %p59 = scmp.eq.s32.totalorder %s58, 0
      %s61 = sadd.s32 %s60, 1
      %s62 = scalar_select %p59, %s60, %s61
      %p65 = pneg %p59
      %p66 = scmp.eq.s32.totalorder %s12, 1
      %p67 = por %p65, %p66
      %p68 = scmp.ne.s32.totalorder %s60, %s63
      %p69 = scmp.eq.s32.totalorder %s12, 0
      %p70 = por %p68, %p69
      %p71 = scmp.ne.s32.totalorder %s60, %s63
      %p72 = scmp.eq.s32.totalorder %s17, 1
      %p73 = por %p71, %p72
      %p74 = scmp.ne.s32.totalorder %s63, %s64
      %p75 = scmp.eq.s32.totalorder %s17, 0
      %p76 = por %p74, %p75
      %p77 = scmp.ne.s32.totalorder %s63, %s64
      %p78 = scmp.eq.s32.totalorder %s18, 1
      %p79 = por %p77, %p78
      %p81 = scmp.ne.s32.totalorder %s64, %s80
      %p82 = scmp.eq.s32.totalorder %s18, 0
      %p83 = por %p81, %p82
      %s84 = ssub.s32 %s19, %s31
      %p85 = scmp.eq.s32.totalorder %s84, 0
      %s87 = sadd.s32 %s86, 1
      %s88 = scalar_select %p85, %s86, %s87
      %p91 = pneg %p85
      %p92 = scmp.eq.s32.totalorder %s12, 1
      %p93 = por %p91, %p92
      %p94 = scmp.ne.s32.totalorder %s86, %s89
      %p95 = scmp.eq.s32.totalorder %s12, 0
      %p96 = por %p94, %p95
      %p97 = scmp.ne.s32.totalorder %s86, %s89
      %p98 = scmp.eq.s32.totalorder %s17, 1
      %p99 = por %p97, %p98
      %p100 = scmp.ne.s32.totalorder %s89, %s90
      %p101 = scmp.eq.s32.totalorder %s17, 0
      %p102 = por %p100, %p101
      %p103 = scmp.ne.s32.totalorder %s89, %s90
      %p104 = scmp.eq.s32.totalorder %s18, 1
      %p105 = por %p103, %p104
      %p107 = scmp.ne.s32.totalorder %s90, %s106
      %p108 = scmp.eq.s32.totalorder %s18, 0
      %p109 = por %p107, %p108
      %p110 = scmp.le.s32.totalorder 1, %s12
      %p111 = scmp.lt.s32.totalorder %s12, 3
      %p112 = pnand %p110, %p111
      %p113 = pneg %p112
      // Predicated region
      $region9: #{tpu_custom_call.1} parent=5 // pred_check
        _
      $region10: #{tpu_custom_call.1} parent=5 // pred_check_branch
        %115 = sbr.rel (%p112) target = $region12
      $region11: #{tpu_custom_call.1} parent=5 // pred_region
        %s116 = ssub.s32 %s12, 1
      $region12: #{tpu_custom_call.1} parent=5 // pred_fallthru
        _
      %p117 = scmp.lt.s32.totalorder %s12, 2
      // Predicated region
      $region13: #{tpu_custom_call.1} parent=5 // pred_check
        %p118 = pneg %p117
      $region14: #{tpu_custom_call.1} parent=5 // pred_check_branch
        %120 = sbr.rel (%p118) target = $region16
      $region15: #{tpu_custom_call.1} parent=5 // pred_region
        // Predicated region
        $region17: #{tpu_custom_call.1} parent=15 // pred_check
          %p121 = pneg %p44
        $region18: #{tpu_custom_call.1} parent=15 // pred_check_branch
          %123 = sbr.rel (%p121) target = $region20
        $region19: #{tpu_custom_call.1} parent=15 // pred_region
          %s124 = sand.u32 %s34, 1
          %s125 = scalar_lea.sflag [#allocation4], %s124
          %s126 = sand.u32 %s34, 1
          %s127 = smul.addr %s126, 16
          %s128 = scalar_lea.vmem [#allocation3], %s127
          %s130 = ssub.s32 256, 256
          %131 = vsyncadd %s125, %s130
          %s132 = smul.addr %s20, 128
          %s133 = scalar_lea.hbm %s0, %s132
          %s134 = sshll.u32 %s128, 4
          %s135 = int_to_ptr.vmem [resolvable:$true] %s134
          %140 = dma.hbm_to_vmem [thread:$0]  %s133, 256, %s135, %s125, 256, 128, 8
        $region20: #{tpu_custom_call.1} parent=15 // pred_fallthru
          _
        // Predicated region
        $region21: #{tpu_custom_call.1} parent=15 // pred_check
          %p141 = pneg %p70
        $region22: #{tpu_custom_call.1} parent=15 // pred_check_branch
          %143 = sbr.rel (%p141) target = $region24
        $region23: #{tpu_custom_call.1} parent=15 // pred_region
          %p144 = scmp.lt.s32.totalorder %s20, 1
          %s145 = scalar_select %p144, %s20, 1
          %s146 = scalar_lea.vmem %s1, %s145
        $region24: #{tpu_custom_call.1} parent=15 // pred_fallthru
          _
      $region16: #{tpu_custom_call.1} parent=5 // pred_fallthru
        _
      %p147 = scmp.le.s32.totalorder 1, %s12
      %p148 = scmp.lt.s32.totalorder %s12, 3
      %p149 = pnand %p147, %p148
      %p150 = pneg %p149
      // Predicated region
      $region25: #{tpu_custom_call.1} parent=5 // pred_check
        _
      $region26: #{tpu_custom_call.1} parent=5 // pred_check_branch
        %152 = sbr.rel (%p149) target = $region28
      $region27: #{tpu_custom_call.1} parent=5 // pred_region
        %s153 = ssub.s32 %s12, 1
        %s154 = sand.u32 %s37, 1
        %s155 = scalar_lea.sflag [#allocation4], %s154
        %s156 = sand.u32 %s37, 1
        %s157 = smul.addr %s156, 16
        %s158 = scalar_lea.vmem [#allocation3], %s157
        // Predicated region
        $region29: #{tpu_custom_call.1} parent=27 // pred_check
          %p159 = pneg %p50
        $region30: #{tpu_custom_call.1} parent=27 // pred_check_branch
          %161 = sbr.rel (%p159) target = $region32
        $region31: #{tpu_custom_call.1} parent=27 // pred_region
          %162 = dma.done %s155, 256
        $region32: #{tpu_custom_call.1} parent=27 // pred_fallthru
          _
        %s163 = sand.u32 %s37, 1
        %s164 = scalar_lea.sflag [#allocation4], %s163
        %s165 = sand.u32 %s37, 1
        %s166 = smul.addr %s165, 16
        %s167 = scalar_lea.vmem [#allocation3], %s166
        %p168 = pneg %p50
        %p169 = pneg %p47
        %p170 = scmp.lt.s32.totalorder %s22, 1
        %s171 = scalar_select %p170, %s22, 1
        %s172 = scalar_lea.vmem %s1, %s171
        %p173 = pneg %p76
        %p174 = pneg %p73
        %p175 = pneg %p102
        %p176 = pneg %p99
        %p177 = scmp.lt.s32.totalorder %s22, 1
        %s178 = scalar_select %p177, %s22, 1
        %s179 = scalar_lea.vmem %s1, %s178
        %p180 = scmp.eq.s32.totalorder %s22, 0
        // Predicated region
        $region33: #{tpu_custom_call.1} parent=27 // pred_check
          %p181 = pneg %p180
        $region34: #{tpu_custom_call.1} parent=27 // pred_check_branch
          %183 = sbr.rel (%p181) target = $region36
        $region35: #{tpu_custom_call.1} parent=27 // pred_region
          %184 = vst [vmem:[#allocation2] sm:$0x1] 0.0
        $region36: #{tpu_custom_call.1} parent=27 // pred_fallthru
          _
        %v185 = vld [vmem:[%s158] sm:$0xff]
        %v186 = vld [vmem:[%s158 + $0x8] sm:$0x3]
        %v187 = vld [vmem:[%s179] sm:$0x1]
        %v188 = vlaneseq
        %v189 = vshrl.u32 %v188, 7
        %v190 = vadd.s32 %v189, 8
        %v191 = vlaneseq
        %v192 = vshrl.u32 %v191, 7
        %v193 = vsub.s32 0, %v192
        %v194 = vrot.slane %v187, %v193
        %vm195 = vcmp.eq.s32.totalorder %v189, %v194
        %vm196 = vcmp.eq.s32.totalorder %v190, %v194
        %v197 = vsel %vm195, %v185, 0.0
        %v198 = vsel %vm196, %v186, 0.0
        %vm199 = vcmask 1041408
        %v200 = vsel %vm199, %v198, 0.0
        %v201 = vadd.f32 %v197, %v200
        %v202 = vrot.slane %v201, 4
        %v203 = vadd.f32 %v201, %v202
        %v204 = vrot.slane %v203, 2
        %v205 = vadd.f32 %v203, %v204
        %v206 = vrot.slane %v205, 1
        %v207 = vadd.f32 %v205, %v206
        %v208 = vsel %vm199, %v186, -inf
        %v209 = vmax.f32 %v185, %v208
        %v210 = vrot.slane %v209, 4
        %v211 = vmax.f32 %v209, %v210
        %v212 = vrot.slane %v211, 2
        %v213 = vmax.f32 %v211, %v212
        %v214 = vrot.slane %v213, 1
        %v215 = vmax.f32 %v213, %v214
        %v216 = vsub.f32 %v185, %v215
        %v217 = vsub.f32 %v186, %v215
        %v218 = vmul.f32 %v216, 1.442695
        %v219 = vpow.pop %v218
        %v220 = vmul.f32 %v217, 1.442695
        %v221 = vpow.pop %v220
        %v222 = vsel %vm199, %v221, 0.0
        %v223 = vadd.f32 %v219, %v222
        %v224 = vrot.slane %v223, 4
        %v225 = vadd.f32 %v223, %v224
        %v226 = vrot.slane %v225, 2
        %v227 = vadd.f32 %v225, %v226
        %v228 = vrot.slane %v227, 1
        %v229 = vadd.f32 %v227, %v228
        %v230 = vlog2.pop %v229
        %v231 = vmul.f32 %v230, 0.6931472
        %v232 = vadd.f32 %v215, %v231
        %vm233 = vcmp.gt.f32.partialorder %v185, -1.0
        %vm234 = vcmp.gt.f32.partialorder %v186, -1.0
        %v235 = vadd.f32 %v185, 2.0
        %v236 = vadd.f32 %v186, 2.0
        %v237 = vsel %vm233, %v235, 0.0
        %v238 = vsel %vm234, %v236, 0.0
        %v239 = vsel %vm199, %v238, 0.0
        %v240 = vadd.f32 %v237, %v239
        %v241 = vrot.slane %v240, 4
        %v242 = vadd.f32 %v240, %v241
        %v243 = vrot.slane %v242, 2
        %v244 = vadd.f32 %v242, %v243
        %v245 = vrot.slane %v244, 1
        %v246 = vadd.f32 %v244, %v245
        %vm247 = vcmp.lt.f32.partialorder %v207, 1.0
        %v248 = vsub.f32 2.0, %v207
        %v249 = vsel %vm247, %v248, 0.0
        %vm250 = vcmp.gt.f32.partialorder %v207, -1.0
        %v251 = vadd.f32 %v207, 2.0
        %v252 = vsel %vm250, %v251, 0.0
        %v253 = vsub.f32 %v249, %v252
        %v254 = vadd.f32 %v246, %v253
        %v255 = vmul.f32 %v254, 0.00025
        %v256 = vsub.f32 %v232, %v207
        %v257 = vmul.f32 %v256, 0.0025
        %v258 = vadd.f32 %v255, %v257
        %v259 = vlaneseq
        %v260 = vand.u32 %v259, 127
        %s261 = smul.u32 %s21, 2
        %s262 = sadd.s32 %s261, %s22
        %s263 = smul.u32 %s262, 128
        %v264 = vstv %s263
        %v265 = vadd.s32 %v264, %v260
        %v266 = vld [vmem:[#allocation2] sm:$0x1]
        %vm267 = vcmp.lt.s32.totalorder %v265, 200
        %v268 = vsel %vm267, %v258, 0.0
        %v269 = vadd.f32 %v266, %v268
        %270 = vst [vmem:[#allocation2] sm:$0x1] %v269
        %p271 = scmp.eq.s32.totalorder %s22, 1
        // Predicated region
        $region37: #{tpu_custom_call.1} parent=27 // pred_check
          %p272 = pneg %p271
        $region38: #{tpu_custom_call.1} parent=27 // pred_check_branch
          %274 = sbr.rel (%p272) target = $region40
        $region39: #{tpu_custom_call.1} parent=27 // pred_region
          %v275 = vld [vmem:[#allocation2] sm:$0x1]
          %vm276 = vcmask 1040384
          %v277 = vsel %vm276, %v275, 0.0
          %278 = vadd.xlane.f32.xlu0 %v277
          %v279 = vpop.xlane.xlu0 %278
          %v280 = vrot.slane %v279, 4
          %v281 = vadd.f32 %v279, %v280
          %v282 = vrot.slane %v281, 2
          %v283 = vadd.f32 %v281, %v282
          %v284 = vrot.slane %v283, 1
          %v285 = vadd.f32 %v283, %v284
          %s286 = vtos %v285
          %v287 = vstv %s286
          %288 = vst [vmem:[#allocation6] sm:$0xff] %v287
        $region40: #{tpu_custom_call.1} parent=27 // pred_fallthru
          _
        // Predicated region
        $region41: #{tpu_custom_call.1} parent=27 // pred_check
          %p289 = pneg %p99
        $region42: #{tpu_custom_call.1} parent=27 // pred_check_branch
          %291 = sbr.rel (%p289) target = $region44
        $region43: #{tpu_custom_call.1} parent=27 // pred_region
          %s293 = ssub.s32 128, 128
          %294 = vsyncadd [#allocation5], %s293
          %s295 = smul.addr %s21, 128
          %s296 = scalar_lea.hbm %s2, %s295
          %s298 = sshll.u32 [#allocation6], 4
          %s299 = int_to_ptr.vmem [resolvable:$true] %s298
          %301 = dma.vmem_to_hbm [thread:$0]  %s299, 128, %s296, [#allocation5]
        $region44: #{tpu_custom_call.1} parent=27 // pred_fallthru
          _
        // Predicated region
        $region45: #{tpu_custom_call.1} parent=27 // pred_check
          %p302 = pneg %p99
        $region46: #{tpu_custom_call.1} parent=27 // pred_check_branch
          %304 = sbr.rel (%p302) target = $region48
        $region47: #{tpu_custom_call.1} parent=27 // pred_region
          %305 = dma.done [#allocation5], 128
        $region48: #{tpu_custom_call.1} parent=27 // pred_fallthru
          _
      $region28: #{tpu_custom_call.1} parent=5 // pred_fallthru
        _
      %p306 = scmp.le.s32.totalorder 2, %s12
      // Predicated region
      $region49: #{tpu_custom_call.1} parent=5 // pred_check
        %p307 = pneg %p306
      $region50: #{tpu_custom_call.1} parent=5 // pred_check_branch
        %309 = sbr.rel (%p307) target = $region52
      $region51: #{tpu_custom_call.1} parent=5 // pred_region
        %s310 = ssub.s32 %s12, 2
      $region52: #{tpu_custom_call.1} parent=5 // pred_fallthru
        _
    $region6: #{tpu_custom_call.1} parent=1 // loop_footer
      %s16 = sadd.s32 1, %s12
    $region7: #{tpu_custom_call.1} parent=1 // loop_footer_branch
      %11 = sbr.rel target = $region3
    $region8: #{tpu_custom_call.1} parent=1 // loop_exit
      _
    %311 = vsyncpa [#allocation4], 1
    %s312 = scalar_lea.sflag [#allocation4], 1
    %313 = vsyncpa %s312, 1
    %314 = vsyncpa [#allocation5], 1
    %s315 = scalar_lea.sflag [#allocation5], 1
    %316 = vsyncpa %s315, 1

</llo_original>
